<compile_context>
chip_gen: v7x
topology: tpu7x:2x2x1
jax: 0.10.0
libtpu: 0.0.40
codegen_flags: <defaults>
</compile_context>

<pallas_src>
import jax
import jax.numpy as jnp
import numpy as np
from jax.experimental import pallas as pl
from jax.experimental.pallas import tpu as pltpu

LANES = 128


def ffnn_kernel(x_ref,
                w1_ref, b1_ref,
                w2_ref, b2_ref,
                w3_ref, b3_ref,
                w4_ref, b4_ref,
                o_ref):
    # x_ref: (F, tb)   -- batch on lanes (lane-dense everywhere below)
    # wN_ref: (out, in), bN_ref: (out, 1)
    x = x_ref[...]

    h1 = jnp.dot(w1_ref[...], x, preferred_element_type=jnp.float32) + b1_ref[...]
    h1 = jnp.maximum(h1, 0.0)                                   # (H, tb)

    h2 = jnp.dot(w2_ref[...], h1, preferred_element_type=jnp.float32) + b2_ref[...]
    h2 = jnp.maximum(h2, 0.0)                                   # (2H, tb)

    h3 = jnp.dot(w3_ref[...], h2, preferred_element_type=jnp.float32) + b3_ref[...]
    h3 = jnp.maximum(h3, 0.0)                                   # (H, tb)

    logits = jnp.dot(w4_ref[...], h3, preferred_element_type=jnp.float32) + b4_ref[...]
    o_ref[...] = jax.nn.sigmoid(logits).astype(o_ref.dtype)     # (1, tb) lane-dense store


def ffnn_forward(x, params, *, batch_tile=2048):
    """x: (B, input_size) float32.  Returns (B, 1) sigmoid outputs.

    params: dict with wN of shape (out, in) and bN of shape (out, 1),
    matching torch nn.Linear layout.
    """
    B, F = x.shape

    # Batch tile: always a multiple of 128 lanes so every store is unmasked.
    tb = min(B, batch_tile)
    tb = ((tb + LANES - 1) // LANES) * LANES
    Bp = ((B + tb - 1) // tb) * tb

    # Batch-on-lanes layout: (F, Bp). Transpose/pad is cheap wrapper-side
    # layout plumbing; it keeps every in-kernel block lane-dense.
    x_t = jnp.transpose(x)                       # (F, B)
    if Bp != B:
        x_t = jnp.pad(x_t, ((0, 0), (0, Bp - B)))

    w1, b1 = params["w1"], params["b1"]
    w2, b2 = params["w2"], params["b2"]
    w3, b3 = params["w3"], params["b3"]
    w4, b4 = params["w4"], params["b4"]

    # Small weights/biases: full-array blocks with a constant index_map, so
    # they are DMA'd once and stay resident in VMEM across the batch grid.
    def full_spec(a):
        return pl.BlockSpec(a.shape, lambda i, _nd=a.ndim: (0,) * _nd)

    out = pl.pallas_call(
        ffnn_kernel,
        out_shape=jax.ShapeDtypeStruct((1, Bp), jnp.float32),
        grid=(Bp // tb,),
        in_specs=[
            pl.BlockSpec((F, tb), lambda i: (0, i)),
            full_spec(w1), full_spec(b1),
            full_spec(w2), full_spec(b2),
            full_spec(w3), full_spec(b3),
            full_spec(w4), full_spec(b4),
        ],
        out_specs=pl.BlockSpec((1, tb), lambda i: (0, i)),
        compiler_params=pltpu.CompilerParams(
            dimension_semantics=("parallel",),
            vmem_limit_bytes=32 * 1024 * 1024,
        ),
    )(x_t, w1, b1, w2, b2, w3, b3, w4, b4)

    # Slice off padding and return torch-shaped (B, 1).
    return jnp.transpose(out[:, :B])


def init_params(key, input_size, hidden_size):
    """Deterministic init mimicking nn.Linear (uniform +-1/sqrt(fan_in)).

    Weights stored (out_features, in_features); biases (out_features, 1).
    """
    dims = [(input_size, hidden_size),
            (hidden_size, hidden_size * 2),
            (hidden_size * 2, hidden_size),
            (hidden_size, 1)]
    params = {}
    for idx, (fan_in, fan_out) in enumerate(dims, start=1):
        key, kw, kb = jax.random.split(key, 3)
        bound = 1.0 / np.sqrt(fan_in)
        params[f"w{idx}"] = jax.random.uniform(
            kw, (fan_out, fan_in), jnp.float32, -bound, bound)
        params[f"b{idx}"] = jax.random.uniform(
            kb, (fan_out, 1), jnp.float32, -bound, bound)
    return params


def ffnn_reference(x, params):
    h = x
    for idx in range(1, 4):
        h = jnp.maximum(h @ params[f"w{idx}"].T + params[f"b{idx}"].T, 0.0)
    return jax.nn.sigmoid(h @ params["w4"].T + params["b4"].T)


if __name__ == "__main__":
    key = jax.random.PRNGKey(0)
    input_size, hidden_size = 16, 32

    kx, kp, kx2, kx3 = jax.random.split(key, 4)
    params = init_params(kp, input_size, hidden_size)

    # Small single-tile case (batch padded up to one 128-lane tile).
    batch = 8
    x = jax.random.normal(kx, (batch, input_size), jnp.float32)
    out = jax.block_until_ready(ffnn_forward(x, params))
    ref = ffnn_reference(x, params)
    np.testing.assert_allclose(np.asarray(out), np.asarray(ref),
                               rtol=1e-5, atol=1e-5)
    assert out.shape == (batch, 1)

    # Multi-tile case: exercises the batch grid (2 steps) with lane-dense
    # (1, 128) output stores and megacore-parallel batch axis.
    batch2 = 256
    x2 = jax.random.normal(kx2, (batch2, input_size), jnp.float32)
    out2 = jax.block_until_ready(ffnn_forward(x2, params, batch_tile=128))
    ref2 = ffnn_reference(x2, params)
    np.testing.assert_allclose(np.asarray(out2), np.asarray(ref2),
                               rtol=1e-5, atol=1e-5)
    assert out2.shape == (batch2, 1)

    # Ragged case: batch not a multiple of the tile -> padded grid + slice.
    batch3 = 300
    x3 = jax.random.normal(kx3, (batch3, input_size), jnp.float32)
    out3 = jax.block_until_ready(ffnn_forward(x3, params, batch_tile=128))
    ref3 = ffnn_reference(x3, params)
    np.testing.assert_allclose(np.asarray(out3), np.asarray(ref3),
                               rtol=1e-5, atol=1e-5)
    assert out3.shape == (batch3, 1)

    print("KERNEL_OK")
</pallas_src>

<mosaic_0001>
module attributes {stable_mosaic.version = 11 : i64} {
  func.func @ffnn_kernel(%arg0: i32, %arg1: memref<16x128xf32, #tpu.memory_space<vmem>>, %arg2: memref<32x16xf32, #tpu.memory_space<vmem>>, %arg3: memref<32x1xf32, #tpu.memory_space<vmem>>, %arg4: memref<64x32xf32, #tpu.memory_space<vmem>>, %arg5: memref<64x1xf32, #tpu.memory_space<vmem>>, %arg6: memref<32x64xf32, #tpu.memory_space<vmem>>, %arg7: memref<32x1xf32, #tpu.memory_space<vmem>>, %arg8: memref<1x32xf32, #tpu.memory_space<vmem>>, %arg9: memref<1x1xf32, #tpu.memory_space<vmem>>, %arg10: memref<1x128xf32, #tpu.memory_space<vmem>>) attributes {dimension_semantics = [#tpu.dimension_semantics<parallel>], iteration_bounds = array<i64: 1>, scalar_prefetch = 0 : i64, scratch_operands = 0 : i64, tpu.core_type = #tpu.core_type<tc>, window_params = [{transform_indices = @transform_0, window_bounds = array<i64: 16, 128>}, {pipeline_mode = #tpu.pipeline_mode<synchronous>, transform_indices = @transform_1, window_bounds = array<i64: 32, 16>}, {pipeline_mode = #tpu.pipeline_mode<synchronous>, transform_indices = @transform_2, window_bounds = array<i64: 32, 1>}, {pipeline_mode = #tpu.pipeline_mode<synchronous>, transform_indices = @transform_3, window_bounds = array<i64: 64, 32>}, {pipeline_mode = #tpu.pipeline_mode<synchronous>, transform_indices = @transform_4, window_bounds = array<i64: 64, 1>}, {pipeline_mode = #tpu.pipeline_mode<synchronous>, transform_indices = @transform_5, window_bounds = array<i64: 32, 64>}, {pipeline_mode = #tpu.pipeline_mode<synchronous>, transform_indices = @transform_6, window_bounds = array<i64: 32, 1>}, {pipeline_mode = #tpu.pipeline_mode<synchronous>, transform_indices = @transform_7, window_bounds = array<i64: 1, 32>}, {pipeline_mode = #tpu.pipeline_mode<synchronous>, transform_indices = @transform_8, window_bounds = array<i64: 1, 1>}, {transform_indices = @transform_9, window_bounds = array<i64: 1, 128>}]} {
    %c0 = arith.constant 0 : index
    %c0_0 = arith.constant 0 : index
    %0 = vector.load %arg1[%c0, %c0_0] : memref<16x128xf32, #tpu.memory_space<vmem>>, vector<16x128xf32>
    %c0_1 = arith.constant 0 : index
    %c0_2 = arith.constant 0 : index
    %1 = vector.load %arg2[%c0_1, %c0_2] : memref<32x16xf32, #tpu.memory_space<vmem>>, vector<32x16xf32>
    %cst = arith.constant dense<0.000000e+00> : vector<32x128xf32>
    %2 = tpu.matmul %1, %0, %cst {dimension_numbers = #tpu.dot_dimension_numbers<[1], [0], [0], [1], [0, 0, 1, 1], [], []>} : vector<32x16xf32>, vector<16x128xf32>, vector<32x128xf32> -> vector<32x128xf32>
    %c0_3 = arith.constant 0 : index
    %c0_4 = arith.constant 0 : index
    %3 = vector.load %arg3[%c0_3, %c0_4] : memref<32x1xf32, #tpu.memory_space<vmem>>, vector<32x1xf32>
    %4 = vector.broadcast %3 : vector<32x1xf32> to vector<32x128xf32>
    %5 = arith.addf %2, %4 : vector<32x128xf32>
    %cst_5 = arith.constant 0.000000e+00 : f32
    %6 = vector.broadcast %cst_5 : f32 to vector<32x128xf32>
    %7 = arith.maximumf %5, %6 : vector<32x128xf32>
    %c0_6 = arith.constant 0 : index
    %c0_7 = arith.constant 0 : index
    %8 = vector.load %arg4[%c0_6, %c0_7] : memref<64x32xf32, #tpu.memory_space<vmem>>, vector<64x32xf32>
    %cst_8 = arith.constant dense<0.000000e+00> : vector<64x128xf32>
    %9 = tpu.matmul %8, %7, %cst_8 {dimension_numbers = #tpu.dot_dimension_numbers<[1], [0], [0], [1], [0, 0, 1, 1], [], []>} : vector<64x32xf32>, vector<32x128xf32>, vector<64x128xf32> -> vector<64x128xf32>
    %c0_9 = arith.constant 0 : index
    %c0_10 = arith.constant 0 : index
    %10 = vector.load %arg5[%c0_9, %c0_10] : memref<64x1xf32, #tpu.memory_space<vmem>>, vector<64x1xf32>
    %11 = vector.broadcast %10 : vector<64x1xf32> to vector<64x128xf32>
    %12 = arith.addf %9, %11 : vector<64x128xf32>
    %cst_11 = arith.constant 0.000000e+00 : f32
    %13 = vector.broadcast %cst_11 : f32 to vector<64x128xf32>
    %14 = arith.maximumf %12, %13 : vector<64x128xf32>
    %c0_12 = arith.constant 0 : index
    %c0_13 = arith.constant 0 : index
    %15 = vector.load %arg6[%c0_12, %c0_13] : memref<32x64xf32, #tpu.memory_space<vmem>>, vector<32x64xf32>
    %cst_14 = arith.constant dense<0.000000e+00> : vector<32x128xf32>
    %16 = tpu.matmul %15, %14, %cst_14 {dimension_numbers = #tpu.dot_dimension_numbers<[1], [0], [0], [1], [0, 0, 1, 1], [], []>} : vector<32x64xf32>, vector<64x128xf32>, vector<32x128xf32> -> vector<32x128xf32>
    %c0_15 = arith.constant 0 : index
    %c0_16 = arith.constant 0 : index
    %17 = vector.load %arg7[%c0_15, %c0_16] : memref<32x1xf32, #tpu.memory_space<vmem>>, vector<32x1xf32>
    %18 = vector.broadcast %17 : vector<32x1xf32> to vector<32x128xf32>
    %19 = arith.addf %16, %18 : vector<32x128xf32>
    %cst_17 = arith.constant 0.000000e+00 : f32
    %20 = vector.broadcast %cst_17 : f32 to vector<32x128xf32>
    %21 = arith.maximumf %19, %20 : vector<32x128xf32>
    %c0_18 = arith.constant 0 : index
    %c0_19 = arith.constant 0 : index
    %22 = vector.load %arg8[%c0_18, %c0_19] : memref<1x32xf32, #tpu.memory_space<vmem>>, vector<1x32xf32>
    %cst_20 = arith.constant dense<0.000000e+00> : vector<1x128xf32>
    %23 = tpu.matmul %22, %21, %cst_20 {dimension_numbers = #tpu.dot_dimension_numbers<[1], [0], [0], [1], [0, 0, 1, 1], [], []>} : vector<1x32xf32>, vector<32x128xf32>, vector<1x128xf32> -> vector<1x128xf32>
    %c0_21 = arith.constant 0 : index
    %c0_22 = arith.constant 0 : index
    %24 = vector.load %arg9[%c0_21, %c0_22] : memref<1x1xf32, #tpu.memory_space<vmem>>, vector<1x1xf32>
    %25 = vector.broadcast %24 : vector<1x1xf32> to vector<1x128xf32>
    %26 = arith.addf %23, %25 : vector<1x128xf32>
    %27 = arith.negf %26 : vector<1x128xf32>
    %28 = math.exp %27 : vector<1x128xf32>
    %cst_23 = arith.constant 1.000000e+00 : f32
    %29 = vector.broadcast %cst_23 : f32 to vector<1x128xf32>
    %30 = arith.addf %29, %28 : vector<1x128xf32>
    %31 = arith.divf %29, %30 : vector<1x128xf32>
    %c0_24 = arith.constant 0 : index
    %c0_25 = arith.constant 0 : index
    %32 = vector.load %arg10[%c0_24, %c0_25] : memref<1x128xf32, #tpu.memory_space<vmem>>, vector<1x128xf32>
    tpu.vector_store %arg10[%c0_24, %c0_25], %31 {strides = array<i32>} : memref<1x128xf32, #tpu.memory_space<vmem>>, vector<1x128xf32>,
    return
  }
  func.func @transform_0(%arg0: i32) -> (i32, i32) {
    %c0_i32 = arith.constant 0 : i32
    %c0_i32_0 = arith.constant 0 : i32
    return %c0_i32, %arg0 : i32, i32
  }
  func.func @transform_1(%arg0: i32) -> (i32, i32) {
    %c0_i32 = arith.constant 0 : i32
    %c0_i32_0 = arith.constant 0 : i32
    %c0_i32_1 = arith.constant 0 : i32
    return %c0_i32, %c0_i32_0 : i32, i32
  }
  func.func @transform_2(%arg0: i32) -> (i32, i32) {
    %c0_i32 = arith.constant 0 : i32
    %c0_i32_0 = arith.constant 0 : i32
    %c0_i32_1 = arith.constant 0 : i32
    return %c0_i32, %c0_i32_0 : i32, i32
  }
  func.func @transform_3(%arg0: i32) -> (i32, i32) {
    %c0_i32 = arith.constant 0 : i32
    %c0_i32_0 = arith.constant 0 : i32
    %c0_i32_1 = arith.constant 0 : i32
    return %c0_i32, %c0_i32_0 : i32, i32
  }
  func.func @transform_4(%arg0: i32) -> (i32, i32) {
    %c0_i32 = arith.constant 0 : i32
    %c0_i32_0 = arith.constant 0 : i32
    %c0_i32_1 = arith.constant 0 : i32
    return %c0_i32, %c0_i32_0 : i32, i32
  }
  func.func @transform_5(%arg0: i32) -> (i32, i32) {
    %c0_i32 = arith.constant 0 : i32
    %c0_i32_0 = arith.constant 0 : i32
    %c0_i32_1 = arith.constant 0 : i32
    return %c0_i32, %c0_i32_0 : i32, i32
  }
  func.func @transform_6(%arg0: i32) -> (i32, i32) {
    %c0_i32 = arith.constant 0 : i32
    %c0_i32_0 = arith.constant 0 : i32
    %c0_i32_1 = arith.constant 0 : i32
    return %c0_i32, %c0_i32_0 : i32, i32
  }
  func.func @transform_7(%arg0: i32) -> (i32, i32) {
    %c0_i32 = arith.constant 0 : i32
    %c0_i32_0 = arith.constant 0 : i32
    %c0_i32_1 = arith.constant 0 : i32
    return %c0_i32, %c0_i32_0 : i32, i32
  }
  func.func @transform_8(%arg0: i32) -> (i32, i32) {
    %c0_i32 = arith.constant 0 : i32
    %c0_i32_0 = arith.constant 0 : i32
    %c0_i32_1 = arith.constant 0 : i32
    return %c0_i32, %c0_i32_0 : i32, i32
  }
  func.func @transform_9(%arg0: i32) -> (i32, i32) {
    %c0_i32 = arith.constant 0 : i32
    %c0_i32_0 = arith.constant 0 : i32
    return %c0_i32, %arg0 : i32, i32
  }
}

</mosaic_0001>

<llo_original>
// kernel: tpu_custom_call.1
$region0: #{tpu_custom_call.1}
  #allocation0 [shape = 'u32[]', space=smem, size = 0x4, offset = 0x4, fixed_abs, tag = 'smem constant byte address 0x4 - core index']
  #allocation1 [shape = 'u32[144,128]{1,0:T(1,128)}', space=vmem, size = 0x12000, scoped, tag = 'internal scratch']
  #allocation2 [shape = 'f32[1,1]{1,0:T(1,128)S(1)}', space=vmem, size = 0x200, scoped, tag = 'scoped memory for tpu_custom_call.1']
  %s0 = inlined_call_operand.vmem [shape: f32[16,128], index: 0, kind: input, shape index: {}]
  %s1 = inlined_call_operand.vmem [shape: f32[32,16], index: 1, kind: input, shape index: {}]
  %s2 = inlined_call_operand.vmem [shape: f32[32,1], index: 2, kind: input, shape index: {}]
  %s3 = inlined_call_operand.vmem [shape: f32[64,32], index: 3, kind: input, shape index: {}]
  %s4 = inlined_call_operand.vmem [shape: f32[64,1], index: 4, kind: input, shape index: {}]
  %s5 = inlined_call_operand.vmem [shape: f32[32,64], index: 5, kind: input, shape index: {}]
  %s6 = inlined_call_operand.vmem [shape: f32[32,1], index: 6, kind: input, shape index: {}]
  %s7 = inlined_call_operand.vmem [shape: f32[1,32], index: 7, kind: input, shape index: {}]
  %s8 = inlined_call_operand.<no memory space> [shape: f32[1,1], index: 8, kind: input, shape index: {}]
  %s9 = inlined_call_operand.hbm [shape: f32[1,128], index: 9, kind: output, shape index: {}]
  %s10 = sld [smem:[#allocation0]]
  $region46: #{tpu_custom_call.1} parent=0
    _
  %s12 = ssub.s32 1, %s10
  %s13 = scalar_select 0, %s12, %s10
  %v14 = vstv %s8
  %15 = vst [vmem:[#allocation2] sm:$0x1] %v14
  $region1: #{tpu_custom_call.1} parent=0
    #allocation3 [shape = 'u8[512]{0}', space=vmem, size = 0x400, scoped, tag = 'output window, operand 0, single buffered']
    #allocation4 [shape = 's32[1]{0}', space=sflag, size = 0x4, scoped, tag = 'scoped memory for tpu_custom_call.1']
    %16 = vsyncpa [#allocation4], 0
    // Predicated region
    $region2: #{tpu_custom_call.1} parent=1 // pred_check
      _
    $region3: #{tpu_custom_call.1} parent=1 // pred_check_branch
      %18 = sbr.rel (0) target = $region5
    $region4: #{tpu_custom_call.1} parent=1 // pred_region
      _
    $region5: #{tpu_custom_call.1} parent=1 // pred_fallthru
      _
    // Predicated region
    $region6: #{tpu_custom_call.1} parent=1 // pred_check
      _
    $region7: #{tpu_custom_call.1} parent=1 // pred_check_branch
      %20 = sbr.rel (0) target = $region9
    $region8: #{tpu_custom_call.1} parent=1 // pred_region
      _
    $region9: #{tpu_custom_call.1} parent=1 // pred_fallthru
      _
    // Predicated region
    $region10: #{tpu_custom_call.1} parent=1 // pred_check
      _
    $region11: #{tpu_custom_call.1} parent=1 // pred_check_branch
      %22 = sbr.rel (0) target = $region13
    $region12: #{tpu_custom_call.1} parent=1 // pred_region
      _
    $region13: #{tpu_custom_call.1} parent=1 // pred_fallthru
      _
    // Predicated region
    $region14: #{tpu_custom_call.1} parent=1 // pred_check
      _
    $region15: #{tpu_custom_call.1} parent=1 // pred_check_branch
      %24 = sbr.rel (0) target = $region17
    $region16: #{tpu_custom_call.1} parent=1 // pred_region
      _
    $region17: #{tpu_custom_call.1} parent=1 // pred_fallthru
      _
    // Predicated region
    $region18: #{tpu_custom_call.1} parent=1 // pred_check
      _
    $region19: #{tpu_custom_call.1} parent=1 // pred_check_branch
      %26 = sbr.rel (0) target = $region21
    $region20: #{tpu_custom_call.1} parent=1 // pred_region
      _
    $region21: #{tpu_custom_call.1} parent=1 // pred_fallthru
      _
    // Predicated region
    $region22: #{tpu_custom_call.1} parent=1 // pred_check
      _
    $region23: #{tpu_custom_call.1} parent=1 // pred_check_branch
      %28 = sbr.rel (0) target = $region25
    $region24: #{tpu_custom_call.1} parent=1 // pred_region
      _
    $region25: #{tpu_custom_call.1} parent=1 // pred_fallthru
      _
    // Predicated region
    $region26: #{tpu_custom_call.1} parent=1 // pred_check
      _
    $region27: #{tpu_custom_call.1} parent=1 // pred_check_branch
      %30 = sbr.rel (0) target = $region29
    $region28: #{tpu_custom_call.1} parent=1 // pred_region
      _
    $region29: #{tpu_custom_call.1} parent=1 // pred_fallthru
      _
    // Predicated region
    $region30: #{tpu_custom_call.1} parent=1 // pred_check
      _
    $region31: #{tpu_custom_call.1} parent=1 // pred_check_branch
      %32 = sbr.rel (0) target = $region33
    $region32: #{tpu_custom_call.1} parent=1 // pred_region
      _
    $region33: #{tpu_custom_call.1} parent=1 // pred_fallthru
      _
    // Predicated region
    $region34: #{tpu_custom_call.1} parent=1 // pred_check
      _
    $region35: #{tpu_custom_call.1} parent=1 // pred_check_branch
      %34 = sbr.rel (0) target = $region37
    $region36: #{tpu_custom_call.1} parent=1 // pred_region
      _
    $region37: #{tpu_custom_call.1} parent=1 // pred_fallthru
      _
    %v35 = vld [vmem:[%s0] sm:$0xff]
    %v36 = vld [vmem:[%s0 + $0x8] sm:$0xff]
    %v37 = vld [vmem:[%s1] sm:$0xff]
    %v38 = vld [vmem:[%s1 + $0x8] sm:$0xff]
    %v39 = vld [vmem:[%s1 + $0x10] sm:$0xff]
    %v40 = vld [vmem:[%s1 + $0x18] sm:$0xff]
    %v41 = vld [vmem:[%s2] sm:$0xff]
    %v42 = vld [vmem:[%s2 + $0x8] sm:$0xff]
    %v43 = vld [vmem:[%s2 + $0x10] sm:$0xff]
    %v44 = vld [vmem:[%s2 + $0x18] sm:$0xff]
    %46 = vset.pattern.permute.xlu0 0
    %47 = vperm.xlu0 %46, %v41
    %v48 = vpop.permute.xlu0 %47
    %51 = vset.pattern.permute.xlu0 0
    %52 = vperm.xlu0 %51, %v42
    %v53 = vpop.permute.xlu0 %52
    %56 = vset.pattern.permute.xlu0 0
    %57 = vperm.xlu0 %56, %v43
    %v58 = vpop.permute.xlu0 %57
    %61 = vset.pattern.permute.xlu0 0
    %62 = vperm.xlu0 %61, %v44
    %v63 = vpop.permute.xlu0 %62
    %vm65 = vcmask 130048
    %v67 = vsel %vm65, %v37, 0
    %v70 = vsel %vm65, %v38, 0
    %v73 = vsel %vm65, %v39, 0
    %v76 = vsel %vm65, %v40, 0
    %78 = vmatprep.subr.mxu0 0.0
    %79 = vmatpush1.msra.mxu0 %v35
    %80 = vmatprep.subr.mxu0 0.0
    %81 = vmatpush1.msra.mxu0 %v36
    %82 = vmatprep.subr.mxu0 0.0
    %83 = vmatpush1.msra.mxu0 0.0
    %84 = vmatprep.subr.mxu0 0.0
    %85 = vmatpush1.msra.mxu0 0.0
    %86 = vmatprep.subr.mxu0 0.0
    %87 = vmatpush1.msra.mxu0 0.0
    %88 = vmatprep.subr.mxu0 0.0
    %89 = vmatpush1.msra.mxu0 0.0
    %90 = vmatprep.subr.mxu0 0.0
    %91 = vmatpush1.msra.mxu0 0.0
    %92 = vmatprep.subr.mxu0 0.0
    %93 = vmatpush1.msra.mxu0 0.0
    %94 = vmatprep.subr.mxu0 0.0
    %95 = vmatpush1.msra.mxu0 0.0
    %96 = vmatprep.subr.mxu0 0.0
    %97 = vmatpush1.msra.mxu0 0.0
    %98 = vmatprep.subr.mxu0 0.0
    %99 = vmatpush1.msra.mxu0 0.0
    %100 = vmatprep.subr.mxu0 0.0
    %101 = vmatpush1.msra.mxu0 0.0
    %102 = vmatprep.subr.mxu0 0.0
    %103 = vmatpush1.msra.mxu0 0.0
    %104 = vmatprep.subr.mxu0 0.0
    %105 = vmatpush1.msra.mxu0 0.0
    %106 = vmatprep.subr.mxu0 0.0
    %107 = vmatpush1.msra.mxu0 0.0
    %108 = vmatprep.subr.mxu0 0.0
    %109 = vmatpush1.msra.mxu0 0.0
    %110 = vmatprep.subr.mxu0 0.0
    %111 = vmatpush1.msra.mxu0 0.0
    %112 = vmatprep.subr.mxu0 0.0
    %113 = vmatpush1.msra.mxu0 0.0
    %114 = vmatprep.subr.mxu0 0.0
    %115 = vmatpush1.msra.mxu0 0.0
    %116 = vmatprep.subr.mxu0 0.0
    %117 = vmatpush1.msra.mxu0 0.0
    %118 = vmatprep.subr.mxu0 0.0
    %119 = vmatpush1.msra.mxu0 0.0
    %120 = vmatprep.subr.mxu0 0.0
    %121 = vmatpush1.msra.mxu0 0.0
    %122 = vmatprep.subr.mxu0 0.0
    %123 = vmatpush1.msra.mxu0 0.0
    %124 = vmatprep.subr.mxu0 0.0
    %125 = vmatpush1.msra.mxu0 0.0
    %126 = vmatprep.subr.mxu0 0.0
    %127 = vmatpush1.msra.mxu0 0.0
    %128 = vmatprep.subr.mxu0 0.0
    %129 = vmatpush1.msra.mxu0 0.0
    %130 = vmatprep.subr.mxu0 0.0
    %131 = vmatpush1.msra.mxu0 0.0
    %132 = vmatprep.subr.mxu0 0.0
    %133 = vmatpush1.msra.mxu0 0.0
    %134 = vmatprep.subr.mxu0 0.0
    %135 = vmatpush1.msra.mxu0 0.0
    %136 = vmatprep.subr.mxu0 0.0
    %137 = vmatpush1.msra.mxu0 0.0
    %138 = vmatprep.subr.mxu0 0.0
    %139 = vmatpush1.msra.mxu0 0.0
    %140 = vmatprep.subr.mxu0 0.0
    %141 = vmatpush1.msra.mxu0 0.0
    %142 = vmatprep.mubr.f32.mxu0 0.0
    %143 = vmatmul.mubr.f32.gmra.mrb[0].mxu0 %v67
    %v144 = vpop.f32.mrb[0].mxu0
    %v145 = vadd.f32 %v48, %v144
    %v146 = vpop.f32.mrb[0].mxu0
    %147 = vmatprep.mubr.f32.mxu0 0.0
    %148 = vmatmul.mubr.f32.gmra.mrb[0].mxu0 %v70
    %v149 = vpop.f32.mrb[0].mxu0
    %v150 = vadd.f32 %v53, %v149
    %v151 = vpop.f32.mrb[0].mxu0
    %152 = vmatprep.mubr.f32.mxu0 0.0
    %153 = vmatmul.mubr.f32.gmra.mrb[0].mxu0 %v73
    %v154 = vpop.f32.mrb[0].mxu0
    %v155 = vadd.f32 %v58, %v154
    %v156 = vpop.f32.mrb[0].mxu0
    %157 = vmatprep.mubr.f32.mxu0 0.0
    %158 = vmatmul.mubr.f32.gmra.mrb[0].mxu0 %v76
    %v159 = vpop.f32.mrb[0].mxu0
    %v160 = vadd.f32 %v63, %v159
    %v161 = vpop.f32.mrb[0].mxu0
    %162 = vdwg.mxu0
    %v163 = vmax.f32 %v145, 0.0
    %v164 = vmax.f32 %v150, 0.0
    %v165 = vmax.f32 %v155, 0.0
    %v166 = vmax.f32 %v160, 0.0
    %v167 = vld [vmem:[%s3] sm:$0xff]
    %v168 = vld [vmem:[%s3 + $0x8] sm:$0xff]
    %v169 = vld [vmem:[%s3 + $0x10] sm:$0xff]
    %v170 = vld [vmem:[%s3 + $0x18] sm:$0xff]
    %v171 = vld [vmem:[%s3 + $0x20] sm:$0xff]
    %v172 = vld [vmem:[%s3 + $0x28] sm:$0xff]
    %v173 = vld [vmem:[%s3 + $0x30] sm:$0xff]
    %v174 = vld [vmem:[%s3 + $0x38] sm:$0xff]
    %v175 = vld [vmem:[%s4] sm:$0xff]
    %v176 = vld [vmem:[%s4 + $0x8] sm:$0xff]
    %v177 = vld [vmem:[%s4 + $0x10] sm:$0xff]
    %v178 = vld [vmem:[%s4 + $0x18] sm:$0xff]
    %v179 = vld [vmem:[%s4 + $0x20] sm:$0xff]
    %v180 = vld [vmem:[%s4 + $0x28] sm:$0xff]
    %v181 = vld [vmem:[%s4 + $0x30] sm:$0xff]
    %v182 = vld [vmem:[%s4 + $0x38] sm:$0xff]
    %184 = vset.pattern.permute.xlu0 0
    %185 = vperm.xlu0 %184, %v175
    %v186 = vpop.permute.xlu0 %185
    %189 = vset.pattern.permute.xlu0 0
    %190 = vperm.xlu0 %189, %v176
    %v191 = vpop.permute.xlu0 %190
    %194 = vset.pattern.permute.xlu0 0
    %195 = vperm.xlu0 %194, %v177
    %v196 = vpop.permute.xlu0 %195
    %199 = vset.pattern.permute.xlu0 0
    %200 = vperm.xlu0 %199, %v178
    %v201 = vpop.permute.xlu0 %200
    %204 = vset.pattern.permute.xlu0 0
    %205 = vperm.xlu0 %204, %v179
    %v206 = vpop.permute.xlu0 %205
    %209 = vset.pattern.permute.xlu0 0
    %210 = vperm.xlu0 %209, %v180
    %v211 = vpop.permute.xlu0 %210
    %214 = vset.pattern.permute.xlu0 0
    %215 = vperm.xlu0 %214, %v181
    %v216 = vpop.permute.xlu0 %215
    %219 = vset.pattern.permute.xlu0 0
    %220 = vperm.xlu0 %219, %v182
    %v221 = vpop.permute.xlu0 %220
    %vm223 = vcmask 261120
    %v225 = vsel %vm223, %v167, 0
    %v228 = vsel %vm223, %v168, 0
    %v231 = vsel %vm223, %v169, 0
    %v234 = vsel %vm223, %v170, 0
    %v237 = vsel %vm223, %v171, 0
    %v240 = vsel %vm223, %v172, 0
    %v243 = vsel %vm223, %v173, 0
    %v246 = vsel %vm223, %v174, 0
    %248 = vmatprep.subr.mxu0 0.0
    %249 = vmatpush1.msra.mxu0 %v163
    %250 = vmatprep.subr.mxu0 0.0
    %251 = vmatpush1.msra.mxu0 %v164
    %252 = vmatprep.subr.mxu0 0.0
    %253 = vmatpush1.msra.mxu0 %v165
    %254 = vmatprep.subr.mxu0 0.0
    %255 = vmatpush1.msra.mxu0 %v166
    %256 = vmatprep.subr.mxu0 0.0
    %257 = vmatpush1.msra.mxu0 0.0
    %258 = vmatprep.subr.mxu0 0.0
    %259 = vmatpush1.msra.mxu0 0.0
    %260 = vmatprep.subr.mxu0 0.0
    %261 = vmatpush1.msra.mxu0 0.0
    %262 = vmatprep.subr.mxu0 0.0
    %263 = vmatpush1.msra.mxu0 0.0
    %264 = vmatprep.subr.mxu0 0.0
    %265 = vmatpush1.msra.mxu0 0.0
    %266 = vmatprep.subr.mxu0 0.0
    %267 = vmatpush1.msra.mxu0 0.0
    %268 = vmatprep.subr.mxu0 0.0
    %269 = vmatpush1.msra.mxu0 0.0
    %270 = vmatprep.subr.mxu0 0.0
    %271 = vmatpush1.msra.mxu0 0.0
    %272 = vmatprep.subr.mxu0 0.0
    %273 = vmatpush1.msra.mxu0 0.0
    %274 = vmatprep.subr.mxu0 0.0
    %275 = vmatpush1.msra.mxu0 0.0
    %276 = vmatprep.subr.mxu0 0.0
    %277 = vmatpush1.msra.mxu0 0.0
    %278 = vmatprep.subr.mxu0 0.0
    %279 = vmatpush1.msra.mxu0 0.0
    %280 = vmatprep.subr.mxu0 0.0
    %281 = vmatpush1.msra.mxu0 0.0
    %282 = vmatprep.subr.mxu0 0.0
    %283 = vmatpush1.msra.mxu0 0.0
    %284 = vmatprep.subr.mxu0 0.0
    %285 = vmatpush1.msra.mxu0 0.0
    %286 = vmatprep.subr.mxu0 0.0
    %287 = vmatpush1.msra.mxu0 0.0
    %288 = vmatprep.subr.mxu0 0.0
    %289 = vmatpush1.msra.mxu0 0.0
    %290 = vmatprep.subr.mxu0 0.0
    %291 = vmatpush1.msra.mxu0 0.0
    %292 = vmatprep.subr.mxu0 0.0
    %293 = vmatpush1.msra.mxu0 0.0
    %294 = vmatprep.subr.mxu0 0.0
    %295 = vmatpush1.msra.mxu0 0.0
    %296 = vmatprep.subr.mxu0 0.0
    %297 = vmatpush1.msra.mxu0 0.0
    %298 = vmatprep.subr.mxu0 0.0
    %299 = vmatpush1.msra.mxu0 0.0
    %300 = vmatprep.subr.mxu0 0.0
    %301 = vmatpush1.msra.mxu0 0.0
    %302 = vmatprep.subr.mxu0 0.0
    %303 = vmatpush1.msra.mxu0 0.0
    %304 = vmatprep.subr.mxu0 0.0
    %305 = vmatpush1.msra.mxu0 0.0
    %306 = vmatprep.subr.mxu0 0.0
    %307 = vmatpush1.msra.mxu0 0.0
    %308 = vmatprep.subr.mxu0 0.0
    %309 = vmatpush1.msra.mxu0 0.0
    %310 = vmatprep.subr.mxu0 0.0
    %311 = vmatpush1.msra.mxu0 0.0
    %312 = vmatprep.mubr.f32.mxu0 0.0
    %313 = vmatmul.mubr.f32.gmra.mrb[0].mxu0 %v225
    %v314 = vpop.f32.mrb[0].mxu0
    %v315 = vadd.f32 %v186, %v314
    %v316 = vpop.f32.mrb[0].mxu0
    %317 = vmatprep.mubr.f32.mxu0 0.0
    %318 = vmatmul.mubr.f32.gmra.mrb[0].mxu0 %v228
    %v319 = vpop.f32.mrb[0].mxu0
    %v320 = vadd.f32 %v191, %v319
    %v321 = vpop.f32.mrb[0].mxu0
    %322 = vmatprep.mubr.f32.mxu0 0.0
    %323 = vmatmul.mubr.f32.gmra.mrb[0].mxu0 %v231
    %v324 = vpop.f32.mrb[0].mxu0
    %v325 = vadd.f32 %v196, %v324
    %v326 = vpop.f32.mrb[0].mxu0
    %327 = vmatprep.mubr.f32.mxu0 0.0
    %328 = vmatmul.mubr.f32.gmra.mrb[0].mxu0 %v234
    %v329 = vpop.f32.mrb[0].mxu0
    %v330 = vadd.f32 %v201, %v329
    %v331 = vpop.f32.mrb[0].mxu0
    %332 = vmatprep.mubr.f32.mxu0 0.0
    %333 = vmatmul.mubr.f32.gmra.mrb[0].mxu0 %v237
    %v334 = vpop.f32.mrb[0].mxu0
    %v335 = vadd.f32 %v206, %v334
    %v336 = vpop.f32.mrb[0].mxu0
    %337 = vmatprep.mubr.f32.mxu0 0.0
    %338 = vmatmul.mubr.f32.gmra.mrb[0].mxu0 %v240
    %v339 = vpop.f32.mrb[0].mxu0
    %v340 = vadd.f32 %v211, %v339
    %v341 = vpop.f32.mrb[0].mxu0
    %342 = vmatprep.mubr.f32.mxu0 0.0
    %343 = vmatmul.mubr.f32.gmra.mrb[0].mxu0 %v243
    %v344 = vpop.f32.mrb[0].mxu0
    %v345 = vadd.f32 %v216, %v344
    %v346 = vpop.f32.mrb[0].mxu0
    %347 = vmatprep.mubr.f32.mxu0 0.0
    %348 = vmatmul.mubr.f32.gmra.mrb[0].mxu0 %v246
    %v349 = vpop.f32.mrb[0].mxu0
    %v350 = vadd.f32 %v221, %v349
    %v351 = vpop.f32.mrb[0].mxu0
    %352 = vdwg.mxu0
    %v353 = vmax.f32 %v315, 0.0
    %v354 = vmax.f32 %v320, 0.0
    %v355 = vmax.f32 %v325, 0.0
    %v356 = vmax.f32 %v330, 0.0
    %v357 = vmax.f32 %v335, 0.0
    %v358 = vmax.f32 %v340, 0.0
    %v359 = vmax.f32 %v345, 0.0
    %v360 = vmax.f32 %v350, 0.0
    %v361 = vld [vmem:[%s5] sm:$0xff]
    %v362 = vld [vmem:[%s5 + $0x8] sm:$0xff]
    %v363 = vld [vmem:[%s5 + $0x10] sm:$0xff]
    %v364 = vld [vmem:[%s5 + $0x18] sm:$0xff]
    %v365 = vld [vmem:[%s6] sm:$0xff]
    %v366 = vld [vmem:[%s6 + $0x8] sm:$0xff]
    %v367 = vld [vmem:[%s6 + $0x10] sm:$0xff]
    %v368 = vld [vmem:[%s6 + $0x18] sm:$0xff]
    %370 = vset.pattern.permute.xlu0 0
    %371 = vperm.xlu0 %370, %v365
    %v372 = vpop.permute.xlu0 %371
    %375 = vset.pattern.permute.xlu0 0
    %376 = vperm.xlu0 %375, %v366
    %v377 = vpop.permute.xlu0 %376
    %380 = vset.pattern.permute.xlu0 0
    %381 = vperm.xlu0 %380, %v367
    %v382 = vpop.permute.xlu0 %381
    %385 = vset.pattern.permute.xlu0 0
    %386 = vperm.xlu0 %385, %v368
    %v387 = vpop.permute.xlu0 %386
    %vm389 = vcmask 523264
    %v391 = vsel %vm389, %v361, 0
    %v394 = vsel %vm389, %v362, 0
    %v397 = vsel %vm389, %v363, 0
    %v400 = vsel %vm389, %v364, 0
    %402 = vmatprep.subr.mxu0 0.0
    %403 = vmatpush1.msra.mxu0 %v353
    %404 = vmatprep.subr.mxu0 0.0
    %405 = vmatpush1.msra.mxu0 %v354
    %406 = vmatprep.subr.mxu0 0.0
    %407 = vmatpush1.msra.mxu0 %v355
    %408 = vmatprep.subr.mxu0 0.0
    %409 = vmatpush1.msra.mxu0 %v356
    %410 = vmatprep.subr.mxu0 0.0
    %411 = vmatpush1.msra.mxu0 %v357
    %412 = vmatprep.subr.mxu0 0.0
    %413 = vmatpush1.msra.mxu0 %v358
    %414 = vmatprep.subr.mxu0 0.0
    %415 = vmatpush1.msra.mxu0 %v359
    %416 = vmatprep.subr.mxu0 0.0
    %417 = vmatpush1.msra.mxu0 %v360
    %418 = vmatprep.subr.mxu0 0.0
    %419 = vmatpush1.msra.mxu0 0.0
    %420 = vmatprep.subr.mxu0 0.0
    %421 = vmatpush1.msra.mxu0 0.0
    %422 = vmatprep.subr.mxu0 0.0
    %423 = vmatpush1.msra.mxu0 0.0
    %424 = vmatprep.subr.mxu0 0.0
    %425 = vmatpush1.msra.mxu0 0.0
    %426 = vmatprep.subr.mxu0 0.0
    %427 = vmatpush1.msra.mxu0 0.0
    %428 = vmatprep.subr.mxu0 0.0
    %429 = vmatpush1.msra.mxu0 0.0
    %430 = vmatprep.subr.mxu0 0.0
    %431 = vmatpush1.msra.mxu0 0.0
    %432 = vmatprep.subr.mxu0 0.0
    %433 = vmatpush1.msra.mxu0 0.0
    %434 = vmatprep.subr.mxu0 0.0
    %435 = vmatpush1.msra.mxu0 0.0
    %436 = vmatprep.subr.mxu0 0.0
    %437 = vmatpush1.msra.mxu0 0.0
    %438 = vmatprep.subr.mxu0 0.0
    %439 = vmatpush1.msra.mxu0 0.0
    %440 = vmatprep.subr.mxu0 0.0
    %441 = vmatpush1.msra.mxu0 0.0
    %442 = vmatprep.subr.mxu0 0.0
    %443 = vmatpush1.msra.mxu0 0.0
    %444 = vmatprep.subr.mxu0 0.0
    %445 = vmatpush1.msra.mxu0 0.0
    %446 = vmatprep.subr.mxu0 0.0
    %447 = vmatpush1.msra.mxu0 0.0
    %448 = vmatprep.subr.mxu0 0.0
    %449 = vmatpush1.msra.mxu0 0.0
    %450 = vmatprep.subr.mxu0 0.0
    %451 = vmatpush1.msra.mxu0 0.0
    %452 = vmatprep.subr.mxu0 0.0
    %453 = vmatpush1.msra.mxu0 0.0
    %454 = vmatprep.subr.mxu0 0.0
    %455 = vmatpush1.msra.mxu0 0.0
    %456 = vmatprep.subr.mxu0 0.0
    %457 = vmatpush1.msra.mxu0 0.0
    %458 = vmatprep.subr.mxu0 0.0
    %459 = vmatpush1.msra.mxu0 0.0
    %460 = vmatprep.subr.mxu0 0.0
    %461 = vmatpush1.msra.mxu0 0.0
    %462 = vmatprep.subr.mxu0 0.0
    %463 = vmatpush1.msra.mxu0 0.0
    %464 = vmatprep.subr.mxu0 0.0
    %465 = vmatpush1.msra.mxu0 0.0
    %466 = vmatprep.mubr.f32.mxu0 0.0
    %467 = vmatmul.mubr.f32.gmra.mrb[0].mxu0 %v391
    %v468 = vpop.f32.mrb[0].mxu0
    %v469 = vadd.f32 %v372, %v468
    %v470 = vpop.f32.mrb[0].mxu0
    %471 = vmatprep.mubr.f32.mxu0 0.0
    %472 = vmatmul.mubr.f32.gmra.mrb[0].mxu0 %v394
    %v473 = vpop.f32.mrb[0].mxu0
    %v474 = vadd.f32 %v377, %v473
    %v475 = vpop.f32.mrb[0].mxu0
    %476 = vmatprep.mubr.f32.mxu0 0.0
    %477 = vmatmul.mubr.f32.gmra.mrb[0].mxu0 %v397
    %v478 = vpop.f32.mrb[0].mxu0
    %v479 = vadd.f32 %v382, %v478
    %v480 = vpop.f32.mrb[0].mxu0
    %481 = vmatprep.mubr.f32.mxu0 0.0
    %482 = vmatmul.mubr.f32.gmra.mrb[0].mxu0 %v400
    %v483 = vpop.f32.mrb[0].mxu0
    %v484 = vadd.f32 %v387, %v483
    %v485 = vpop.f32.mrb[0].mxu0
    %486 = vdwg.mxu0
    %v487 = vmax.f32 %v469, 0.0
    %v488 = vmax.f32 %v474, 0.0
    %v489 = vmax.f32 %v479, 0.0
    %v490 = vmax.f32 %v484, 0.0
    %v491 = vld [vmem:[%s7] sm:$0x1]
    %v492 = vld [vmem:[#allocation2] sm:$0x1]
    %494 = vset.pattern.permute.xlu0 0
    %495 = vperm.xlu0 %494, %v492
    %v496 = vpop.permute.xlu0 %495
    %v498 = vlaneseq
    %v499 = vshrl.u32 %v498, 7
    %v500 = vsub.s32 0, %v499
    %v501 = vrot.slane %v496, %v500
    %v503 = vsel %vm223, %v491, 0
    %505 = vmatprep.subr.mxu0 0.0
    %506 = vmatpush1.msra.mxu0 %v487
    %507 = vmatprep.subr.mxu0 0.0
    %508 = vmatpush1.msra.mxu0 %v488
    %509 = vmatprep.subr.mxu0 0.0
    %510 = vmatpush1.msra.mxu0 %v489
    %511 = vmatprep.subr.mxu0 0.0
    %512 = vmatpush1.msra.mxu0 %v490
    %513 = vmatprep.subr.mxu0 0.0
    %514 = vmatpush1.msra.mxu0 0.0
    %515 = vmatprep.subr.mxu0 0.0
    %516 = vmatpush1.msra.mxu0 0.0
    %517 = vmatprep.subr.mxu0 0.0
    %518 = vmatpush1.msra.mxu0 0.0
    %519 = vmatprep.subr.mxu0 0.0
    %520 = vmatpush1.msra.mxu0 0.0
    %521 = vmatprep.subr.mxu0 0.0
    %522 = vmatpush1.msra.mxu0 0.0
    %523 = vmatprep.subr.mxu0 0.0
    %524 = vmatpush1.msra.mxu0 0.0
    %525 = vmatprep.subr.mxu0 0.0
    %526 = vmatpush1.msra.mxu0 0.0
    %527 = vmatprep.subr.mxu0 0.0
    %528 = vmatpush1.msra.mxu0 0.0
    %529 = vmatprep.subr.mxu0 0.0
    %530 = vmatpush1.msra.mxu0 0.0
    %531 = vmatprep.subr.mxu0 0.0
    %532 = vmatpush1.msra.mxu0 0.0
    %533 = vmatprep.subr.mxu0 0.0
    %534 = vmatpush1.msra.mxu0 0.0
    %535 = vmatprep.subr.mxu0 0.0
    %536 = vmatpush1.msra.mxu0 0.0
    %537 = vmatprep.subr.mxu0 0.0
    %538 = vmatpush1.msra.mxu0 0.0
    %539 = vmatprep.subr.mxu0 0.0
    %540 = vmatpush1.msra.mxu0 0.0
    %541 = vmatprep.subr.mxu0 0.0
    %542 = vmatpush1.msra.mxu0 0.0
    %543 = vmatprep.subr.mxu0 0.0
    %544 = vmatpush1.msra.mxu0 0.0
    %545 = vmatprep.subr.mxu0 0.0
    %546 = vmatpush1.msra.mxu0 0.0
    %547 = vmatprep.subr.mxu0 0.0
    %548 = vmatpush1.msra.mxu0 0.0
    %549 = vmatprep.subr.mxu0 0.0
    %550 = vmatpush1.msra.mxu0 0.0
    %551 = vmatprep.subr.mxu0 0.0
    %552 = vmatpush1.msra.mxu0 0.0
    %553 = vmatprep.subr.mxu0 0.0
    %554 = vmatpush1.msra.mxu0 0.0
    %555 = vmatprep.subr.mxu0 0.0
    %556 = vmatpush1.msra.mxu0 0.0
    %557 = vmatprep.subr.mxu0 0.0
    %558 = vmatpush1.msra.mxu0 0.0
    %559 = vmatprep.subr.mxu0 0.0
    %560 = vmatpush1.msra.mxu0 0.0
    %561 = vmatprep.subr.mxu0 0.0
    %562 = vmatpush1.msra.mxu0 0.0
    %563 = vmatprep.subr.mxu0 0.0
    %564 = vmatpush1.msra.mxu0 0.0
    %565 = vmatprep.subr.mxu0 0.0
    %566 = vmatpush1.msra.mxu0 0.0
    %567 = vmatprep.subr.mxu0 0.0
    %568 = vmatpush1.msra.mxu0 0.0
    %569 = vmatprep.mubr.f32.mxu0 0.0
    %570 = vmatmul.mubr.f32.gmra.mrb[0].mxu0 %v503
    %v571 = vpop.f32.mrb[0].mxu0
    %v572 = vadd.f32 %v501, %v571
    %v573 = vpop.f32.mrb[0].mxu0
    %574 = vdwg.mxu0
    %v575 = vxor.u32 %v572, 2147483648
    %v576 = vmul.f32 %v575, 1.442695
    %v577 = vpow.pop %v576
    %v578 = vadd.f32 %v577, 1.0
    %v579 = vrcp.pop %v578
    %v580 = vmul.f32 1.0, %v579
    %581 = vst [vmem:[#allocation3] sm:$0x1] %v580
    // Predicated region
    $region38: #{tpu_custom_call.1} parent=1 // pred_check
      _
    $region39: #{tpu_custom_call.1} parent=1 // pred_check_branch
      %583 = sbr.rel (0) target = $region41
    $region40: #{tpu_custom_call.1} parent=1 // pred_region
      %s585 = ssub.s32 16, 16
      %586 = vsyncadd [#allocation4], %s585
      %s588 = sshll.u32 [#allocation3], 4
      %s589 = int_to_ptr.vmem [resolvable:$true] %s588
      %591 = dma.vmem_to_hbm [thread:$0]  %s589, 16, %s9, [#allocation4]
    $region41: #{tpu_custom_call.1} parent=1 // pred_fallthru
      _
    // Predicated region
    $region42: #{tpu_custom_call.1} parent=1 // pred_check
      _
    $region43: #{tpu_custom_call.1} parent=1 // pred_check_branch
      %593 = sbr.rel (0) target = $region45
    $region44: #{tpu_custom_call.1} parent=1 // pred_region
      %594 = dma.done [#allocation4], 16
    $region45: #{tpu_custom_call.1} parent=1 // pred_fallthru
      _
    %595 = vsyncpa [#allocation4], 1

</llo_original>
